<compile_context>
chip_gen: v5e
topology: v5e:2x2
jax: 0.10.0
libtpu: 0.0.40
codegen_flags: <defaults>
</compile_context>

<pallas_src>
import functools
import math

import jax
import jax.numpy as jnp
from jax.experimental import pallas as pl
from jax.experimental.pallas import tpu as pltpu


# ---------------------------------------------------------------------------
# Positional-encoding buffer (identical formula to the PyTorch __init__).
# ---------------------------------------------------------------------------
def _make_pe(d_model: int, max_len: int) -> jnp.ndarray:
    assert d_model % 2 == 0, "d_model must be even (same limitation as the PyTorch ref)"
    position = jnp.arange(max_len, dtype=jnp.float32)[:, None]               # [max_len, 1]
    div_term = jnp.exp(
        jnp.arange(0, d_model, 2, dtype=jnp.float32) * (-math.log(10000.0) / d_model)
    )                                                                         # [d_model/2]
    pe = jnp.zeros((max_len, 1, d_model), dtype=jnp.float32)
    pe = pe.at[:, 0, 0::2].set(jnp.sin(position * div_term))
    pe = pe.at[:, 0, 1::2].set(jnp.cos(position * div_term))
    return pe


# ---------------------------------------------------------------------------
# Kernel bodies (pure VPU broadcast-add; memory-bound).
# ---------------------------------------------------------------------------
def _pe_add_stream_kernel(x_ref, pe_ref, o_ref):
    # x_ref: (ts, B, D), pe_ref: (ts, 1, D)  -> broadcast over the batch axis.
    o_ref[...] = x_ref[...] + pe_ref[...]


def _pe_add_resident_kernel(ts, x_ref, pe_ref, o_ref):
    # pe_ref is a single VMEM-resident (s_pad, 1, D) block (DMA'd once); slice
    # the rows for this grid step out of it.
    i = pl.program_id(0)
    o_ref[...] = x_ref[...] + pe_ref[pl.ds(i * ts, ts)]


# ---------------------------------------------------------------------------
# Tile-size heuristic.
# ---------------------------------------------------------------------------
_TARGET_TILE_BYTES = 5 << 20          # ~5 MiB of (padded) x per grid step
_PE_RESIDENT_MAX_BYTES = 2 << 20      # make pe resident when one copy <= 2 MiB
_VMEM_LIMIT_BYTES = 32 * 1024 * 1024  # explicit scoped-VMEM ceiling (safe on v5e/v6e/v7x)


def _choose_seq_tile(S: int, B: int, D: int, dtype,
                     target_bytes: int = _TARGET_TILE_BYTES) -> int:
    """Seq tile so the *padded* VMEM x-tile is ~target_bytes, with >=4 grid steps."""
    itemsize = jnp.dtype(dtype).itemsize
    sublanes = {4: 8, 2: 16, 1: 32}.get(itemsize, 8)
    pad_b = -(-B // sublanes) * sublanes            # sublane padding of the (B, D) face
    pad_d = -(-D // 128) * 128                      # lane padding
    row_bytes = pad_b * pad_d * itemsize            # padded VMEM bytes per seq row of x
    # TODO(synk): if a single seq row already exceeds the VMEM budget (huge B*D),
    # a second grid axis over batch would be needed; not required for typical shapes.
    ts = max(1, target_bytes // row_bytes)
    if S >= 4:
        # >= 4 steps: 2+ pipelined steps per TensorCore on v7x megacore.
        ts = min(ts, pl.cdiv(S, 4))
    ts = max(1, min(ts, S))
    # Prefer an even step count (balances v7x's two TensorCores); bounded search.
    for cand in range(ts, max(0, ts - 8), -1):
        if pl.cdiv(S, cand) % 2 == 0:
            return int(cand)
    return int(ts)


# ---------------------------------------------------------------------------
# Public wrapper.
# ---------------------------------------------------------------------------
def positional_encoding(x: jnp.ndarray, pe: jnp.ndarray, *,
                        in_place: bool = False,
                        pe_resident: bool | None = None) -> jnp.ndarray:
    """x: [S, B, D], pe: [max_len, 1, D]  ->  [S, B, D]  (== x + pe[:S])."""
    S, B, D = x.shape
    max_len = pe.shape[0]
    assert pe.shape == (max_len, 1, D), f"pe shape {pe.shape} incompatible with x {x.shape}"
    assert S <= max_len, "seq_len exceeds max_len of the positional-encoding buffer"

    if pe.dtype != x.dtype:
        # Prefer caching pe in the activation dtype at init (make_positional_encoding)
        # so this per-call cast is a no-op.
        pe = pe.astype(x.dtype)

    ts = _choose_seq_tile(S, B, D, x.dtype)
    n_steps = pl.cdiv(S, ts)
    s_pad = n_steps * ts                      # rows covered by the grid (>= S)

    itemsize = jnp.dtype(x.dtype).itemsize
    pad_d = -(-D // 128) * 128
    pe_resident_bytes = s_pad * pad_d * itemsize
    if pe_resident is None:
        pe_resident = (s_pad <= max_len) and (pe_resident_bytes <= _PE_RESIDENT_MAX_BYTES)
    else:
        pe_resident = pe_resident and (s_pad <= max_len)

    if pe_resident:
        kernel = functools.partial(_pe_add_resident_kernel, ts)
        # Full-extent block with a constant index_map: DMA'd once, reused every step.
        pe_spec = pl.BlockSpec((s_pad, 1, D), lambda i: (0, 0, 0))
    else:
        kernel = _pe_add_stream_kernel
        pe_spec = pl.BlockSpec((ts, 1, D), lambda i: (i, 0, 0))

    return pl.pallas_call(
        kernel,
        out_shape=jax.ShapeDtypeStruct((S, B, D), x.dtype),
        grid=(n_steps,),
        in_specs=[
            # Last two block dims (B, D) are full-extent -> valid for any dtype;
            # D sits on the lane axis (lane-dense for real d_model >= 128).
            pl.BlockSpec((ts, B, D), lambda i: (i, 0, 0)),
            pe_spec,
        ],
        out_specs=pl.BlockSpec((ts, B, D), lambda i: (i, 0, 0)),
        # Only useful when the caller donates x; otherwise XLA inserts a copy.
        input_output_aliases=({0: 0} if in_place else {}),
        compiler_params=pltpu.CompilerParams(
            dimension_semantics=("parallel",),
            vmem_limit_bytes=_VMEM_LIMIT_BYTES,
        ),
    )(x, pe)


def make_positional_encoding(d_model: int, max_len: int = 5000,
                             dtype=jnp.float32):
    """Module-style factory: builds the pe buffer once (in the activation dtype)."""
    pe = _make_pe(d_model, max_len).astype(dtype)

    def apply(x: jnp.ndarray, *, in_place: bool = False) -> jnp.ndarray:
        return positional_encoding(x, pe, in_place=in_place)

    return apply, pe


# ---------------------------------------------------------------------------
# Demo / correctness checks.
# ---------------------------------------------------------------------------
if __name__ == "__main__":
    key = jax.random.PRNGKey(0)
    k1, k2, k3 = jax.random.split(key, 3)

    # Case 1: module-like shapes, S divisible by the tile, resident-pe path.
    d_model, max_len, seq_len, batch = 32, 64, 8, 2
    apply_pe, pe_buf = make_positional_encoding(d_model, max_len, dtype=jnp.float32)
    x = jax.random.normal(k1, (seq_len, batch, d_model), dtype=jnp.float32)
    out = jax.block_until_ready(apply_pe(x))
    ref = x + pe_buf[:seq_len]
    assert out.shape == (seq_len, batch, d_model)
    assert jnp.allclose(out, ref, atol=1e-6), "mismatch vs reference (even S, resident pe)"

    # Case 2: ragged S (boundary block is masked, no pad/slice), streamed-pe path forced.
    seq_odd = 7
    x2 = jax.random.normal(k2, (seq_odd, batch, d_model), dtype=jnp.float32)
    out2 = jax.block_until_ready(positional_encoding(x2, pe_buf, pe_resident=False))
    ref2 = x2 + pe_buf[:seq_odd]
    assert out2.shape == (seq_odd, batch, d_model)
    assert jnp.allclose(out2, ref2, atol=1e-6), "mismatch vs reference (ragged S, streamed pe)"

    # Case 3: lane-dense d_model (128), sublane-dense batch (8), ragged S, resident pe.
    d3, ml3, s3, b3 = 128, 32, 13, 8
    pe3 = _make_pe(d3, ml3)
    x3 = jax.random.normal(k3, (s3, b3, d3), dtype=jnp.float32)
    out3 = jax.block_until_ready(positional_encoding(x3, pe3))
    ref3 = x3 + pe3[:s3]
    assert out3.shape == (s3, b3, d3)
    assert jnp.allclose(out3, ref3, atol=1e-6), "mismatch vs reference (lane-dense case)"

    print("KERNEL_OK")
</pallas_src>

<mosaic_0001>
module attributes {stable_mosaic.version = 11 : i64} {
  func.func @_pe_add_resident_kernel(%arg0: i32, %arg1: memref<2x2x32xf32, #tpu.memory_space<vmem>>, %arg2: memref<8x1x32xf32, #tpu.memory_space<vmem>>, %arg3: memref<2x2x32xf32, #tpu.memory_space<vmem>>) attributes {dimension_semantics = [#tpu.dimension_semantics<parallel>], iteration_bounds = array<i64: 4>, scalar_prefetch = 0 : i64, scratch_operands = 0 : i64, tpu.core_type = #tpu.core_type<tc>, window_params = [{transform_indices = @transform_0, window_bounds = array<i64: 2, 2, 32>}, {transform_indices = @transform_1, window_bounds = array<i64: 8, 1, 32>}, {transform_indices = @transform_2, window_bounds = array<i64: 2, 2, 32>}]} {
    %c0 = arith.constant 0 : index
    %c0_0 = arith.constant 0 : index
    %c0_1 = arith.constant 0 : index
    %0 = vector.load %arg1[%c0, %c0_0, %c0_1] : memref<2x2x32xf32, #tpu.memory_space<vmem>>, vector<2x2x32xf32>
    %c2_i32 = arith.constant 2 : i32
    %1 = arith.muli %arg0, %c2_i32 : i32
    %2 = arith.index_cast %1 : i32 to index
    %c0_2 = arith.constant 0 : index
    %c0_3 = arith.constant 0 : index
    %3 = vector.load %arg2[%2, %c0_2, %c0_3] : memref<8x1x32xf32, #tpu.memory_space<vmem>>, vector<2x1x32xf32>
    %4 = vector.broadcast %3 : vector<2x1x32xf32> to vector<2x2x32xf32>
    %5 = arith.addf %0, %4 : vector<2x2x32xf32>
    %c0_4 = arith.constant 0 : index
    %c0_5 = arith.constant 0 : index
    %c0_6 = arith.constant 0 : index
    %6 = vector.load %arg3[%c0_4, %c0_5, %c0_6] : memref<2x2x32xf32, #tpu.memory_space<vmem>>, vector<2x2x32xf32>
    tpu.vector_store %arg3[%c0_4, %c0_5, %c0_6], %5 {strides = array<i32>} : memref<2x2x32xf32, #tpu.memory_space<vmem>>, vector<2x2x32xf32>,
    return
  }
  func.func @transform_0(%arg0: i32) -> (i32, i32, i32) {
    %c0_i32 = arith.constant 0 : i32
    %c0_i32_0 = arith.constant 0 : i32
    %c0_i32_1 = arith.constant 0 : i32
    return %arg0, %c0_i32, %c0_i32_0 : i32, i32, i32
  }
  func.func @transform_1(%arg0: i32) -> (i32, i32, i32) {
    %c0_i32 = arith.constant 0 : i32
    %c0_i32_0 = arith.constant 0 : i32
    %c0_i32_1 = arith.constant 0 : i32
    %c0_i32_2 = arith.constant 0 : i32
    return %c0_i32, %c0_i32_0, %c0_i32_1 : i32, i32, i32
  }
  func.func @transform_2(%arg0: i32) -> (i32, i32, i32) {
    %c0_i32 = arith.constant 0 : i32
    %c0_i32_0 = arith.constant 0 : i32
    %c0_i32_1 = arith.constant 0 : i32
    return %arg0, %c0_i32, %c0_i32_0 : i32, i32, i32
  }
}

</mosaic_0001>

<llo_original>
// kernel: tpu_custom_call.1
$region0: #{tpu_custom_call.1}
  #allocation0 [shape = 'u32[]', space=smem, size = 0x4, offset = 0x4, fixed_abs, tag = 'smem constant byte address 0x4 - core index']
  #allocation1 [shape = 'u32[72,128]{1,0:T(1,128)}', space=vmem, size = 0x9000, scoped, tag = 'internal scratch']
  %s0 = inlined_call_operand.vmem [shape: f32[8,2,32], index: 0, kind: input, shape index: {}]
  %s1 = inlined_call_operand.vmem [shape: f32[64,1,32], index: 1, kind: input, shape index: {}]
  %s2 = inlined_call_operand.hbm [shape: f32[8,2,32], index: 2, kind: output, shape index: {}]
  %s3 = sld [smem:[#allocation0]]
  $region41: #{tpu_custom_call.1} parent=0
    _
  %s5 = ssub.s32 1, %s3
  %s6 = scalar_select 0, %s5, %s3
  $region1: #{tpu_custom_call.1} parent=0
    #allocation2 [shape = 'u8[4096]{0}', space=vmem, size = 0x1000, scoped, tag = 'output window, operand 0']
    #allocation3 [shape = 's32[2]{0}', space=sflag, size = 0x8, scoped, tag = 'scoped memory for tpu_custom_call.1']
    %7 = vsyncpa [#allocation3], 0
    %s8 = scalar_lea.sflag [#allocation3], 1
    %9 = vsyncpa %s8, 0
    loop: start=0, step=1, limit=6
    $region2: #{tpu_custom_call.1} parent=1 // loop_pre_header
      _
    $region3: #{tpu_custom_call.1} parent=1 // loop_header
      %s11 = sphi 0, %s15
      %p12 = scmp.ge.s32.totalorder %s11, 6
      %s21 = sphi 0, %s23
      %s24 = sphi 0, %s21
      %s25 = sphi 0, %s24
      %s41 = sphi 0, %s25
      %s45 = sphi 0, %s45
      %s47 = sphi 0, %s45
      %s48 = sphi 0, %s47
      %s62 = sphi 0, %s48
      %s68 = sphi 0, %s70
      %s71 = sphi 0, %s68
      %s72 = sphi 0, %s71
      %s88 = sphi 0, %s72
    $region4: #{tpu_custom_call.1} parent=1 // loop_header_branch
      %14 = sbr.rel (%p12) target = $region8
    $region5: #{tpu_custom_call.1} parent=1 // loop_body
      %s16 = ssub.s32 %s11, 1
      %s17 = ssub.s32 %s11, 2
      %s18 = sadd.s32 %s11, 1
      %s19 = ssub.s32 %s11, %s18
      %p20 = scmp.eq.s32.totalorder %s19, 0
      %s22 = sadd.s32 %s21, 1
      %s23 = scalar_select %p20, %s21, %s22
      %p26 = pneg %p20
      %p27 = scmp.eq.s32.totalorder %s11, 3
      %p28 = por %p26, %p27
      %p29 = scmp.ne.s32.totalorder %s21, %s24
      %p30 = scmp.eq.s32.totalorder %s11, 0
      %p31 = por %p29, %p30
      %p32 = scmp.ne.s32.totalorder %s21, %s24
      %p33 = scmp.eq.s32.totalorder %s16, 3
      %p34 = por %p32, %p33
      %p35 = scmp.ne.s32.totalorder %s24, %s25
      %p36 = scmp.eq.s32.totalorder %s16, 0
      %p37 = por %p35, %p36
      %p38 = scmp.ne.s32.totalorder %s24, %s25
      %p39 = scmp.eq.s32.totalorder %s17, 3
      %p40 = por %p38, %p39
      %p42 = scmp.ne.s32.totalorder %s25, %s41
      %p43 = scmp.eq.s32.totalorder %s17, 0
      %p44 = por %p42, %p43
      %s46 = sadd.s32 %s45, 1
      %p49 = scmp.eq.s32.totalorder %s11, 3
      %p50 = scmp.ne.s32.totalorder %s45, %s47
      %p51 = scmp.eq.s32.totalorder %s11, 0
      %p52 = por %p50, %p51
      %p53 = scmp.ne.s32.totalorder %s45, %s47
      %p54 = scmp.eq.s32.totalorder %s16, 3
      %p55 = por %p53, %p54
      %p56 = scmp.ne.s32.totalorder %s47, %s48
      %p57 = scmp.eq.s32.totalorder %s16, 0
      %p58 = por %p56, %p57
      %p59 = scmp.ne.s32.totalorder %s47, %s48
      %p60 = scmp.eq.s32.totalorder %s17, 3
      %p61 = por %p59, %p60
      %p63 = scmp.ne.s32.totalorder %s48, %s62
      %p64 = scmp.eq.s32.totalorder %s17, 0
      %p65 = por %p63, %p64
      %s66 = ssub.s32 %s11, %s18
      %p67 = scmp.eq.s32.totalorder %s66, 0
      %s69 = sadd.s32 %s68, 1
      %s70 = scalar_select %p67, %s68, %s69
      %p73 = pneg %p67
      %p74 = scmp.eq.s32.totalorder %s11, 3
      %p75 = por %p73, %p74
      %p76 = scmp.ne.s32.totalorder %s68, %s71
      %p77 = scmp.eq.s32.totalorder %s11, 0
      %p78 = por %p76, %p77
      %p79 = scmp.ne.s32.totalorder %s68, %s71
      %p80 = scmp.eq.s32.totalorder %s16, 3
      %p81 = por %p79, %p80
      %p82 = scmp.ne.s32.totalorder %s71, %s72
      %p83 = scmp.eq.s32.totalorder %s16, 0
      %p84 = por %p82, %p83
      %p85 = scmp.ne.s32.totalorder %s71, %s72
      %p86 = scmp.eq.s32.totalorder %s17, 3
      %p87 = por %p85, %p86
      %p89 = scmp.ne.s32.totalorder %s72, %s88
      %p90 = scmp.eq.s32.totalorder %s17, 0
      %p91 = por %p89, %p90
      %p92 = scmp.le.s32.totalorder 1, %s11
      %p93 = scmp.lt.s32.totalorder %s11, 5
      %p94 = pnand %p92, %p93
      %p95 = pneg %p94
      // Predicated region
      $region9: #{tpu_custom_call.1} parent=5 // pred_check
        _
      $region10: #{tpu_custom_call.1} parent=5 // pred_check_branch
        %97 = sbr.rel (%p94) target = $region12
      $region11: #{tpu_custom_call.1} parent=5 // pred_region
        %s98 = ssub.s32 %s11, 1
        // Predicated region
        $region13: #{tpu_custom_call.1} parent=11 // pred_check
          %p99 = pneg %p58
        $region14: #{tpu_custom_call.1} parent=11 // pred_check_branch
          %101 = sbr.rel (%p99) target = $region16
        $region15: #{tpu_custom_call.1} parent=11 // pred_region
          _
        $region16: #{tpu_custom_call.1} parent=11 // pred_fallthru
          _
      $region12: #{tpu_custom_call.1} parent=5 // pred_fallthru
        _
      %p102 = scmp.lt.s32.totalorder %s11, 4
      // Predicated region
      $region17: #{tpu_custom_call.1} parent=5 // pred_check
        %p103 = pneg %p102
      $region18: #{tpu_custom_call.1} parent=5 // pred_check_branch
        %105 = sbr.rel (%p103) target = $region20
      $region19: #{tpu_custom_call.1} parent=5 // pred_region
        // Predicated region
        $region21: #{tpu_custom_call.1} parent=19 // pred_check
          %p106 = pneg %p31
        $region22: #{tpu_custom_call.1} parent=19 // pred_check_branch
          %108 = sbr.rel (%p106) target = $region24
        $region23: #{tpu_custom_call.1} parent=19 // pred_region
          %s109 = smul.u32 2, %s11
          %p110 = scmp.lt.s32.totalorder %s109, 7
          %s111 = scalar_select %p110, %s109, 7
          %s112 = smul.addr %s111, 2
          %s113 = scalar_lea.vmem %s0, %s112
          %s114 = smul.u32 2, %s11
        $region24: #{tpu_custom_call.1} parent=19 // pred_fallthru
          _
      $region20: #{tpu_custom_call.1} parent=5 // pred_fallthru
        _
      %p115 = scmp.le.s32.totalorder 1, %s11
      %p116 = scmp.lt.s32.totalorder %s11, 5
      %p117 = pnand %p115, %p116
      %p118 = pneg %p117
      // Predicated region
      $region25: #{tpu_custom_call.1} parent=5 // pred_check
        _
      $region26: #{tpu_custom_call.1} parent=5 // pred_check_branch
        %120 = sbr.rel (%p117) target = $region28
      $region27: #{tpu_custom_call.1} parent=5 // pred_region
        %s121 = ssub.s32 %s11, 1
        %s122 = smul.u32 2, %s16
        %p123 = scmp.lt.s32.totalorder %s122, 7
        %s124 = scalar_select %p123, %s122, 7
        %s125 = smul.addr %s124, 2
        %s126 = scalar_lea.vmem %s0, %s125
        %p127 = pneg %p37
        %p128 = pneg %p34
        %p129 = pneg %p58
        %p130 = pneg %p55
        %p131 = pneg %p84
        %p132 = pneg %p81
        %s133 = sand.u32 %s71, 1
        %s134 = scalar_lea.sflag [#allocation3], %s133
        %s135 = sand.u32 %s71, 1
        %s136 = smul.addr %s135, 4
        %s137 = scalar_lea.vmem [#allocation2], %s136
        %s138 = smul.u32 2, %s16
        %p139 = scmp.lt.s32.totalorder %s138, 7
        %s140 = scalar_select %p139, %s138, 7
        %s141 = smul.addr %s140, 2
        %s142 = scalar_lea.vmem %s0, %s141
        %s143 = smul.u32 2, %s16
        %s144 = smul.u32 2, %s16
        %v145 = vld [vmem:[%s142] sm:$0x3]
        %v146 = vld [vmem:[%s142 + $0x2] sm:$0x3]
        %s147 = smul.u32 %s16, 2
        %s148 = scalar_lea.vmem %s1, %s147
        %v149 = vld [vmem:[%s148] sm:$0x1]
        %v150 = vld [vmem:[%s148 + $0x1] sm:$0x1]
        %v153 = vperm.slane %v149, 0
        %v154 = vperm.slane %v150, 0
        %v157 = vadd.f32 %v145, %v153
        %v158 = vadd.f32 %v146, %v154
        %vm159 = vcmask 254976
        %160 = vst.msk [vmem:[%s137] sm:$0x3] %vm159, %v157
        %161 = vst.msk [vmem:[%s137 + $0x2] sm:$0x3] %vm159, %v158
        %s162 = sand.u32 %s71, 1
        %s163 = scalar_lea.sflag [#allocation3], %s162
        %s164 = sand.u32 %s71, 1
        %s165 = smul.addr %s164, 4
        %s166 = scalar_lea.vmem [#allocation2], %s165
        // Predicated region
        $region29: #{tpu_custom_call.1} parent=27 // pred_check
          %p167 = pneg %p81
        $region30: #{tpu_custom_call.1} parent=27 // pred_check_branch
          %169 = sbr.rel (%p167) target = $region32
        $region31: #{tpu_custom_call.1} parent=27 // pred_region
          %s170 = smul.u32 2, %s16
          %172 = vsyncadd %s163, 0
          %s173 = smul.addr %s170, 2
          %s174 = scalar_lea.hbm %s2, %s173
          %s175 = sshll.u32 %s166, 4
          %s176 = int_to_ptr.vmem [resolvable:$true] %s175
          %s177 = sshll.u32 %s174, 4
          %s178 = int_to_ptr.hbm [resolvable:$true] %s177
          %183 = dma.vmem_to_hbm [thread:$0]  %s176, 64, %s178, %s163, 32, 32, 2
        $region32: #{tpu_custom_call.1} parent=27 // pred_fallthru
          _
      $region28: #{tpu_custom_call.1} parent=5 // pred_fallthru
        _
      %p184 = scmp.le.s32.totalorder 2, %s11
      // Predicated region
      $region33: #{tpu_custom_call.1} parent=5 // pred_check
        %p185 = pneg %p184
      $region34: #{tpu_custom_call.1} parent=5 // pred_check_branch
        %187 = sbr.rel (%p185) target = $region36
      $region35: #{tpu_custom_call.1} parent=5 // pred_region
        %s188 = ssub.s32 %s11, 2
        // Predicated region
        $region37: #{tpu_custom_call.1} parent=35 // pred_check
          %p189 = pneg %p87
        $region38: #{tpu_custom_call.1} parent=35 // pred_check_branch
          %191 = sbr.rel (%p189) target = $region40
        $region39: #{tpu_custom_call.1} parent=35 // pred_region
          %s192 = sand.u32 %s72, 1
          %s193 = scalar_lea.sflag [#allocation3], %s192
          %s194 = sand.u32 %s72, 1
          %s195 = smul.addr %s194, 4
          %s196 = scalar_lea.vmem [#allocation2], %s195
          %198 = dma.done %s193, 64
        $region40: #{tpu_custom_call.1} parent=35 // pred_fallthru
          _
      $region36: #{tpu_custom_call.1} parent=5 // pred_fallthru
        _
    $region6: #{tpu_custom_call.1} parent=1 // loop_footer
      %s15 = sadd.s32 1, %s11
    $region7: #{tpu_custom_call.1} parent=1 // loop_footer_branch
      %10 = sbr.rel target = $region3
    $region8: #{tpu_custom_call.1} parent=1 // loop_exit
      _
    %199 = vsyncpa [#allocation3], 1
    %s200 = scalar_lea.sflag [#allocation3], 1
    %201 = vsyncpa %s200, 1

</llo_original>
